<compile_context>
chip_gen: v7x
topology: tpu7x:2x2x1
jax: 0.10.0
libtpu: 0.0.40
codegen_flags: <defaults>
</compile_context>

<pallas_src>
import jax
import jax.numpy as jnp
from jax.experimental import pallas as pl
from jax.experimental.pallas import tpu as pltpu

IN_DIM, H1, H2, H3, OUT_DIM = 69, 100, 100, 20, 1
PAD = 128            # lane-aligned feature width for the hidden layers
PAD_IN = 80          # padded input width: >= 69, multiple of 16 (bf16 packs 2 rows/sublane)
MAX_TB = 4096        # max batch-tile rows; (4096,80) bf16 tile = 640 KiB, x2 buffers
TARGET_STEPS = 4     # aim for >= 4 grid steps (pipelining depth + v7x 2-TC sharding)


def _cdiv(a, m):
    return -(-a // m)


def _round_up(a, m):
    return _cdiv(a, m) * m


def _choose_tile(B, max_tile):
    """Batch-tile rows: multiple of 128, <= max_tile, targeting >= TARGET_STEPS steps."""
    b_pad = _round_up(max(B, 1), 128)
    tb = _round_up(_cdiv(b_pad, TARGET_STEPS), 128)
    return max(128, min(tb, max_tile))


def mlp_kernel(x_ref, w1_ref, w_ref, b_ref, w4_ref, b4_ref, o_ref):
    """One batch tile.

    x_ref : (TB, 80)        padded input tile (pipelined over the grid, matmul dtype)
    w1_ref: (80, 128)       padded W1 (resident, matmul dtype)
    w_ref : (2, 128, 128)   padded W2/W3 (resident, matmul dtype)
    b_ref : (8, 128)        rows 0..2 = padded b1/b2/b3 (resident, f32)
    w4_ref: (128, 128)      column 0 = padded w4, rest zero (resident, matmul dtype)
    b4_ref: (1,) in SMEM    final bias scalar (f32)
    o_ref : (TB, 1)         output tile (f32)
    """
    cdt = w1_ref.dtype  # matmul-operand dtype (bf16 by default, or f32)

    h = jnp.dot(x_ref[...], w1_ref[...], preferred_element_type=jnp.float32)
    h = jnp.maximum(h + b_ref[0:1, :], 0.0)

    h = jnp.dot(h.astype(cdt), w_ref[0], preferred_element_type=jnp.float32)
    h = jnp.maximum(h + b_ref[1:2, :], 0.0)

    h = jnp.dot(h.astype(cdt), w_ref[1], preferred_element_type=jnp.float32)
    h = jnp.maximum(h + b_ref[2:3, :], 0.0)

    # Final 20 -> 1 layer as a 4th MXU matmul (column 0 of w4_ref holds w4): this keeps
    # the per-row dot product off the XLU so the vector-extended slots only carry the
    # vmatmul pushes.  Only lane 0 of y is meaningful.
    y = jnp.dot(h.astype(cdt), w4_ref[...], preferred_element_type=jnp.float32)
    o_ref[...] = jnp.tanh(y[:, :1] + b4_ref[0]).astype(o_ref.dtype)


def init_params(key):
    """PyTorch nn.Linear-style init; weights stored as (in_features, out_features)."""
    dims = [(IN_DIM, H1), (H1, H2), (H2, H3), (H3, OUT_DIM)]
    params = {}
    keys = jax.random.split(key, 2 * len(dims))
    for i, (fan_in, fan_out) in enumerate(dims):
        bound = float(fan_in) ** -0.5
        params[f"w{i + 1}"] = jax.random.uniform(
            keys[2 * i], (fan_in, fan_out), jnp.float32, -bound, bound)
        params[f"b{i + 1}"] = jax.random.uniform(
            keys[2 * i + 1], (fan_out,), jnp.float32, -bound, bound)
    return params


def pack_params(params, matmul_dtype=jnp.bfloat16):
    """Zero-pad every layer to MXU-friendly operands.  bf16 by default (native MXU rate
    on v5e/v6e/v7x); biases and the final scalar stay f32."""
    w1p = jnp.zeros((PAD_IN, PAD), jnp.float32).at[:IN_DIM, :H1].set(params["w1"])

    wpack = jnp.stack([
        jnp.zeros((PAD, PAD), jnp.float32).at[:H1, :H2].set(params["w2"]),
        jnp.zeros((PAD, PAD), jnp.float32).at[:H2, :H3].set(params["w3"]),
    ])                                                            # (2, 128, 128)

    bpack = jnp.zeros((8, PAD), jnp.float32)
    bpack = bpack.at[0, :H1].set(params["b1"])
    bpack = bpack.at[1, :H2].set(params["b2"])
    bpack = bpack.at[2, :H3].set(params["b3"])                    # (8, 128)

    w4full = jnp.zeros((PAD, PAD), jnp.float32).at[:H3, 0].set(params["w4"][:, 0])
    b4 = params["b4"].reshape((1,)).astype(jnp.float32)

    return {
        "w1p": w1p.astype(matmul_dtype),
        "wpack": wpack.astype(matmul_dtype),
        "bpack": bpack,
        "w4full": w4full.astype(matmul_dtype),
        "b4": b4,
    }


def mlp_forward(x, packed, *, max_tile=MAX_TB):
    """x: (B, 69) float32. packed: output of pack_params. Returns (B, 1) float32."""
    B = x.shape[0]
    mdt = packed["w1p"].dtype
    itemsize = jnp.dtype(mdt).itemsize

    TB = _choose_tile(B, max_tile)
    B_pad = _round_up(max(B, 1), TB)
    grid = (B_pad // TB,)

    # Padded rows are all-zero; their outputs are sliced off below, so no in-kernel
    # tail masking is needed.
    x_pad = jnp.zeros((B_pad, PAD_IN), mdt).at[:B, :IN_DIM].set(x.astype(mdt))

    # Cost estimate counts the *streamed/padded* bytes and the padded MXU FLOPs.
    weight_bytes = (packed["w1p"].size + packed["wpack"].size
                    + packed["w4full"].size) * itemsize \
                   + packed["bpack"].size * 4 + 4
    cost = pl.CostEstimate(
        flops=2 * B_pad * (PAD_IN * PAD + PAD * PAD + PAD * PAD + PAD * PAD),
        transcendentals=B_pad,
        bytes_accessed=B_pad * PAD_IN * itemsize + weight_bytes + B_pad * 4,
    )

    out = pl.pallas_call(
        mlp_kernel,
        out_shape=jax.ShapeDtypeStruct((B_pad, OUT_DIM), jnp.float32),
        grid=grid,
        in_specs=[
            pl.BlockSpec((TB, PAD_IN), lambda i: (i, 0)),          # x tile (pipelined)
            pl.BlockSpec((PAD_IN, PAD), lambda i: (0, 0)),         # W1 (resident)
            pl.BlockSpec((2, PAD, PAD), lambda i: (0, 0, 0)),      # W2/W3 (resident)
            pl.BlockSpec((8, PAD), lambda i: (0, 0)),              # b1..b3 (resident)
            pl.BlockSpec((PAD, PAD), lambda i: (0, 0)),            # w4 as column 0 (resident)
            pl.BlockSpec(memory_space=pltpu.MemorySpace.SMEM),     # b4 scalar
        ],
        out_specs=pl.BlockSpec((TB, OUT_DIM), lambda i: (i, 0)),
        compiler_params=pltpu.CompilerParams(
            dimension_semantics=("parallel",),
            vmem_limit_bytes=48 * 1024 * 1024,   # headroom for big tiles on v5e (16 MiB default)
        ),
        cost_estimate=cost,
    )(x_pad, packed["w1p"], packed["wpack"], packed["bpack"],
      packed["w4full"], packed["b4"])

    return out[:B]


def mlp_ref(x, p):
    """Pure-JAX reference of the same forward pass (f32, unpadded)."""
    h = jnp.maximum(x @ p["w1"] + p["b1"], 0.0)
    h = jnp.maximum(h @ p["w2"] + p["b2"], 0.0)
    h = jnp.maximum(h @ p["w3"] + p["b3"], 0.0)
    return jnp.tanh(h @ p["w4"] + p["b4"])


if __name__ == "__main__":
    key = jax.random.PRNGKey(0)
    k_params, k_x = jax.random.split(key)

    params = init_params(k_params)
    B = 8
    x = jax.random.normal(k_x, (B, IN_DIM), jnp.float32)

    ref = mlp_ref(x, params)

    # Default bf16 matmul-operand path (native MXU rate on all generations).
    packed_bf16 = pack_params(params)                       # bf16 default
    out_bf16 = jax.block_until_ready(mlp_forward(x, packed_bf16))
    assert out_bf16.shape == (B, OUT_DIM), out_bf16.shape
    assert jnp.allclose(out_bf16, ref, atol=5e-2, rtol=5e-2), "bf16 kernel mismatch vs reference"

    # f32 matmul-operand path (exact vs reference up to accumulation order).
    packed_f32 = pack_params(params, jnp.float32)
    out_f32 = jax.block_until_ready(mlp_forward(x, packed_f32))
    assert out_f32.shape == (B, OUT_DIM), out_f32.shape
    assert jnp.allclose(out_f32, ref, atol=1e-4, rtol=1e-4), "f32 kernel mismatch vs reference"

    print("KERNEL_OK")
</pallas_src>

<mosaic_0001>
module attributes {stable_mosaic.version = 11 : i64} {
  func.func @mlp_kernel(%arg0: i32, %arg1: memref<128x80xbf16, #tpu.memory_space<vmem>>, %arg2: memref<80x128xbf16, #tpu.memory_space<vmem>>, %arg3: memref<2x128x128xbf16, #tpu.memory_space<vmem>>, %arg4: memref<8x128xf32, #tpu.memory_space<vmem>>, %arg5: memref<128x128xbf16, #tpu.memory_space<vmem>>, %arg6: memref<1xf32, #tpu.memory_space<smem>>, %arg7: memref<128x1xf32, #tpu.memory_space<vmem>>) attributes {dimension_semantics = [#tpu.dimension_semantics<parallel>], iteration_bounds = array<i64: 1>, scalar_prefetch = 0 : i64, scratch_operands = 0 : i64, tpu.core_type = #tpu.core_type<tc>, window_params = [{transform_indices = @transform_0, window_bounds = array<i64: 128, 80>}, {pipeline_mode = #tpu.pipeline_mode<synchronous>, transform_indices = @transform_1, window_bounds = array<i64: 80, 128>}, {pipeline_mode = #tpu.pipeline_mode<synchronous>, transform_indices = @transform_2, window_bounds = array<i64: 2, 128, 128>}, {pipeline_mode = #tpu.pipeline_mode<synchronous>, transform_indices = @transform_3, window_bounds = array<i64: 8, 128>}, {pipeline_mode = #tpu.pipeline_mode<synchronous>, transform_indices = @transform_4, window_bounds = array<i64: 128, 128>}, {transform_indices = @transform_5, window_bounds = array<i64: 1>}, {transform_indices = @transform_6, window_bounds = array<i64: 128, 1>}]} {
    %c0 = arith.constant 0 : index
    %c0_0 = arith.constant 0 : index
    %0 = vector.load %arg1[%c0, %c0_0] : memref<128x80xbf16, #tpu.memory_space<vmem>>, vector<128x80xbf16>
    %c0_1 = arith.constant 0 : index
    %c0_2 = arith.constant 0 : index
    %1 = vector.load %arg2[%c0_1, %c0_2] : memref<80x128xbf16, #tpu.memory_space<vmem>>, vector<80x128xbf16>
    %cst = arith.constant dense<0.000000e+00> : vector<128x128xf32>
    %2 = tpu.matmul %0, %1, %cst {dimension_numbers = #tpu.dot_dimension_numbers<[1], [0], [0], [1], [0, 0, 1, 1], [], []>} : vector<128x80xbf16>, vector<80x128xbf16>, vector<128x128xf32> -> vector<128x128xf32>
    %c0_3 = arith.constant 0 : index
    %c0_4 = arith.constant 0 : index
    %3 = vector.load %arg4[%c0_3, %c0_4] : memref<8x128xf32, #tpu.memory_space<vmem>>, vector<1x128xf32>
    %4 = vector.broadcast %3 : vector<1x128xf32> to vector<128x128xf32>
    %5 = arith.addf %2, %4 : vector<128x128xf32>
    %cst_5 = arith.constant 0.000000e+00 : f32
    %6 = vector.broadcast %cst_5 : f32 to vector<128x128xf32>
    %7 = arith.maximumf %5, %6 : vector<128x128xf32>
    %8 = arith.truncf %7 : vector<128x128xf32> to vector<128x128xbf16>
    %c0_6 = arith.constant 0 : index
    %c0_7 = arith.constant 0 : index
    %c0_8 = arith.constant 0 : index
    %9 = vector.load %arg3[%c0_6, %c0_7, %c0_8] : memref<2x128x128xbf16, #tpu.memory_space<vmem>>, vector<1x128x128xbf16>
    %10 = vector.shape_cast %9 : vector<1x128x128xbf16> to vector<128x128xbf16>
    %cst_9 = arith.constant dense<0.000000e+00> : vector<128x128xf32>
    %11 = tpu.matmul %8, %10, %cst_9 {dimension_numbers = #tpu.dot_dimension_numbers<[1], [0], [0], [1], [0, 0, 1, 1], [], []>} : vector<128x128xbf16>, vector<128x128xbf16>, vector<128x128xf32> -> vector<128x128xf32>
    %c1 = arith.constant 1 : index
    %c0_10 = arith.constant 0 : index
    %12 = vector.load %arg4[%c1, %c0_10] : memref<8x128xf32, #tpu.memory_space<vmem>>, vector<1x128xf32>
    %13 = vector.broadcast %12 : vector<1x128xf32> to vector<128x128xf32>
    %14 = arith.addf %11, %13 : vector<128x128xf32>
    %cst_11 = arith.constant 0.000000e+00 : f32
    %15 = vector.broadcast %cst_11 : f32 to vector<128x128xf32>
    %16 = arith.maximumf %14, %15 : vector<128x128xf32>
    %17 = arith.truncf %16 : vector<128x128xf32> to vector<128x128xbf16>
    %c1_12 = arith.constant 1 : index
    %c0_13 = arith.constant 0 : index
    %c0_14 = arith.constant 0 : index
    %18 = vector.load %arg3[%c1_12, %c0_13, %c0_14] : memref<2x128x128xbf16, #tpu.memory_space<vmem>>, vector<1x128x128xbf16>
    %19 = vector.shape_cast %18 : vector<1x128x128xbf16> to vector<128x128xbf16>
    %cst_15 = arith.constant dense<0.000000e+00> : vector<128x128xf32>
    %20 = tpu.matmul %17, %19, %cst_15 {dimension_numbers = #tpu.dot_dimension_numbers<[1], [0], [0], [1], [0, 0, 1, 1], [], []>} : vector<128x128xbf16>, vector<128x128xbf16>, vector<128x128xf32> -> vector<128x128xf32>
    %c2 = arith.constant 2 : index
    %c0_16 = arith.constant 0 : index
    %21 = vector.load %arg4[%c2, %c0_16] : memref<8x128xf32, #tpu.memory_space<vmem>>, vector<1x128xf32>
    %22 = vector.broadcast %21 : vector<1x128xf32> to vector<128x128xf32>
    %23 = arith.addf %20, %22 : vector<128x128xf32>
    %cst_17 = arith.constant 0.000000e+00 : f32
    %24 = vector.broadcast %cst_17 : f32 to vector<128x128xf32>
    %25 = arith.maximumf %23, %24 : vector<128x128xf32>
    %26 = arith.truncf %25 : vector<128x128xf32> to vector<128x128xbf16>
    %c0_18 = arith.constant 0 : index
    %c0_19 = arith.constant 0 : index
    %27 = vector.load %arg5[%c0_18, %c0_19] : memref<128x128xbf16, #tpu.memory_space<vmem>>, vector<128x128xbf16>
    %cst_20 = arith.constant dense<0.000000e+00> : vector<128x128xf32>
    %28 = tpu.matmul %26, %27, %cst_20 {dimension_numbers = #tpu.dot_dimension_numbers<[1], [0], [0], [1], [0, 0, 1, 1], [], []>} : vector<128x128xbf16>, vector<128x128xbf16>, vector<128x128xf32> -> vector<128x128xf32>
    %29 = vector.extract_strided_slice %28 {offsets = [0, 0], sizes = [128, 1], strides = [1, 1]} : vector<128x128xf32> to vector<128x1xf32>
    %c0_21 = arith.constant 0 : index
    %30 = memref.load %arg6[%c0_21] : memref<1xf32, #tpu.memory_space<smem>>
    %31 = vector.broadcast %30 : f32 to vector<128x1xf32>
    %32 = arith.addf %29, %31 : vector<128x1xf32>
    %33 = math.tanh %32 : vector<128x1xf32>
    %c0_22 = arith.constant 0 : index
    %c0_23 = arith.constant 0 : index
    %34 = vector.load %arg7[%c0_22, %c0_23] : memref<128x1xf32, #tpu.memory_space<vmem>>, vector<128x1xf32>
    tpu.vector_store %arg7[%c0_22, %c0_23], %33 {strides = array<i32>} : memref<128x1xf32, #tpu.memory_space<vmem>>, vector<128x1xf32>,
    return
  }
  func.func @transform_0(%arg0: i32) -> (i32, i32) {
    %c0_i32 = arith.constant 0 : i32
    %c0_i32_0 = arith.constant 0 : i32
    return %arg0, %c0_i32 : i32, i32
  }
  func.func @transform_1(%arg0: i32) -> (i32, i32) {
    %c0_i32 = arith.constant 0 : i32
    %c0_i32_0 = arith.constant 0 : i32
    %c0_i32_1 = arith.constant 0 : i32
    return %c0_i32, %c0_i32_0 : i32, i32
  }
  func.func @transform_2(%arg0: i32) -> (i32, i32, i32) {
    %c0_i32 = arith.constant 0 : i32
    %c0_i32_0 = arith.constant 0 : i32
    %c0_i32_1 = arith.constant 0 : i32
    %c0_i32_2 = arith.constant 0 : i32
    return %c0_i32, %c0_i32_0, %c0_i32_1 : i32, i32, i32
  }
  func.func @transform_3(%arg0: i32) -> (i32, i32) {
    %c0_i32 = arith.constant 0 : i32
    %c0_i32_0 = arith.constant 0 : i32
    %c0_i32_1 = arith.constant 0 : i32
    return %c0_i32, %c0_i32_0 : i32, i32
  }
  func.func @transform_4(%arg0: i32) -> (i32, i32) {
    %c0_i32 = arith.constant 0 : i32
    %c0_i32_0 = arith.constant 0 : i32
    %c0_i32_1 = arith.constant 0 : i32
    return %c0_i32, %c0_i32_0 : i32, i32
  }
  func.func @transform_5(%arg0: i32) -> i32 {
    %c0_i32 = arith.constant 0 : i32
    %c0_i32_0 = arith.constant 0 : i32
    return %c0_i32 : i32
  }
  func.func @transform_6(%arg0: i32) -> (i32, i32) {
    %c0_i32 = arith.constant 0 : i32
    %c0_i32_0 = arith.constant 0 : i32
    return %arg0, %c0_i32 : i32, i32
  }
}

</mosaic_0001>

<llo_original>
// kernel: tpu_custom_call.1
$region0: #{tpu_custom_call.1}
  #allocation0 [shape = 'u32[]', space=smem, size = 0x4, offset = 0x4, fixed_abs, tag = 'smem constant byte address 0x4 - core index']
  #allocation1 [shape = 'u32[144,128]{1,0:T(1,128)}', space=vmem, size = 0x12000, scoped, tag = 'internal scratch']
  #allocation2 [shape = 'f32[1]{0:T(128)S(6)}', space=smem, size = 0x200, scoped, tag = 'scoped memory for tpu_custom_call.1']
  %s0 = inlined_call_operand.vmem [shape: bf16[128,80], index: 0, kind: input, shape index: {}]
  %s1 = inlined_call_operand.vmem [shape: bf16[80,128], index: 1, kind: input, shape index: {}]
  %s2 = inlined_call_operand.hbm [shape: bf16[2,128,128], index: 2, kind: input, shape index: {}]
  %s3 = inlined_call_operand.vmem [shape: f32[8,128], index: 3, kind: input, shape index: {}]
  %s4 = inlined_call_operand.vmem [shape: bf16[128,128], index: 4, kind: input, shape index: {}]
  %s5 = inlined_call_operand.<no memory space> [shape: f32[1], index: 5, kind: input, shape index: {}]
  %s6 = inlined_call_operand.vmem [shape: f32[128,1], index: 6, kind: output, shape index: {}]
  %s7 = sld [smem:[#allocation0]]
  $region38: #{tpu_custom_call.1} parent=0
    _
  %s9 = ssub.s32 1, %s7
  %s10 = scalar_select 0, %s9, %s7
  %11 = sst [smem:[#allocation2]] %s5
  $region1: #{tpu_custom_call.1} parent=0
    #allocation3 [shape = 'u8[65536]{0}', space=vmem, size = 0x10000, scoped, tag = 'input window, operand 2, single buffered']
    #allocation4 [shape = 's32[1]{0}', space=sflag, size = 0x4, scoped, tag = 'scoped memory for tpu_custom_call.1']
    %12 = vsyncpa [#allocation4], 0
    // Predicated region
    $region2: #{tpu_custom_call.1} parent=1 // pred_check
      _
    $region3: #{tpu_custom_call.1} parent=1 // pred_check_branch
      %14 = sbr.rel (0) target = $region5
    $region4: #{tpu_custom_call.1} parent=1 // pred_region
      _
    $region5: #{tpu_custom_call.1} parent=1 // pred_fallthru
      _
    // Predicated region
    $region6: #{tpu_custom_call.1} parent=1 // pred_check
      _
    $region7: #{tpu_custom_call.1} parent=1 // pred_check_branch
      %16 = sbr.rel (0) target = $region9
    $region8: #{tpu_custom_call.1} parent=1 // pred_region
      _
    $region9: #{tpu_custom_call.1} parent=1 // pred_fallthru
      _
    // Predicated region
    $region10: #{tpu_custom_call.1} parent=1 // pred_check
      _
    $region11: #{tpu_custom_call.1} parent=1 // pred_check_branch
      %18 = sbr.rel (0) target = $region13
    $region12: #{tpu_custom_call.1} parent=1 // pred_region
      %s20 = ssub.s32 2048, 2048
      %21 = vsyncadd [#allocation4], %s20
      %s22 = sshll.u32 [#allocation3], 4
      %s23 = int_to_ptr.vmem [resolvable:$true] %s22
      %28 = dma.hbm_to_vmem [thread:$0]  %s2, 2048, %s23, [#allocation4], 64, 64, 4
    $region13: #{tpu_custom_call.1} parent=1 // pred_fallthru
      _
    // Predicated region
    $region14: #{tpu_custom_call.1} parent=1 // pred_check
      _
    $region15: #{tpu_custom_call.1} parent=1 // pred_check_branch
      %30 = sbr.rel (0) target = $region17
    $region16: #{tpu_custom_call.1} parent=1 // pred_region
      _
    $region17: #{tpu_custom_call.1} parent=1 // pred_fallthru
      _
    // Predicated region
    $region18: #{tpu_custom_call.1} parent=1 // pred_check
      _
    $region19: #{tpu_custom_call.1} parent=1 // pred_check_branch
      %32 = sbr.rel (0) target = $region21
    $region20: #{tpu_custom_call.1} parent=1 // pred_region
      _
    $region21: #{tpu_custom_call.1} parent=1 // pred_fallthru
      _
    // Predicated region
    $region22: #{tpu_custom_call.1} parent=1 // pred_check
      _
    $region23: #{tpu_custom_call.1} parent=1 // pred_check_branch
      %34 = sbr.rel (0) target = $region25
    $region24: #{tpu_custom_call.1} parent=1 // pred_region
      _
    $region25: #{tpu_custom_call.1} parent=1 // pred_fallthru
      _
    // Predicated region
    $region26: #{tpu_custom_call.1} parent=1 // pred_check
      _
    $region27: #{tpu_custom_call.1} parent=1 // pred_check_branch
      %36 = sbr.rel (0) target = $region29
    $region28: #{tpu_custom_call.1} parent=1 // pred_region
      %37 = dma.done [#allocation4], 2048
    $region29: #{tpu_custom_call.1} parent=1 // pred_fallthru
      _
    %v39 = vld [vmem:[%s0] sm:$0xf]
    %v40 = vld [vmem:[%s0 + $0x4] sm:$0xf]
    %v41 = vld [vmem:[%s0 + $0x8] sm:$0xf]
    %v42 = vld [vmem:[%s0 + $0xc] sm:$0xf]
    %v43 = vld [vmem:[%s0 + $0x10] sm:$0xf]
    %v44 = vld [vmem:[%s0 + $0x14] sm:$0xf]
    %v45 = vld [vmem:[%s0 + $0x18] sm:$0xf]
    %v46 = vld [vmem:[%s0 + $0x1c] sm:$0xf]
    %v47 = vld [vmem:[%s0 + $0x20] sm:$0xf]
    %v48 = vld [vmem:[%s0 + $0x24] sm:$0xf]
    %v49 = vld [vmem:[%s0 + $0x28] sm:$0xf]
    %v50 = vld [vmem:[%s0 + $0x2c] sm:$0xf]
    %v51 = vld [vmem:[%s0 + $0x30] sm:$0xf]
    %v52 = vld [vmem:[%s0 + $0x34] sm:$0xf]
    %v53 = vld [vmem:[%s0 + $0x38] sm:$0xf]
    %v54 = vld [vmem:[%s0 + $0x3c] sm:$0xf]
    %v55 = vld [vmem:[%s1] sm:$0xf]
    %v56 = vld [vmem:[%s1 + $0x4] sm:$0xf]
    %v57 = vld [vmem:[%s1 + $0x8] sm:$0xf]
    %v58 = vld [vmem:[%s1 + $0xc] sm:$0xf]
    %v59 = vld [vmem:[%s1 + $0x10] sm:$0xf]
    %v60 = vld [vmem:[%s1 + $0x14] sm:$0xf]
    %v61 = vld [vmem:[%s1 + $0x18] sm:$0xf]
    %v62 = vld [vmem:[%s1 + $0x1c] sm:$0xf]
    %v63 = vld [vmem:[%s1 + $0x20] sm:$0xf]
    %v64 = vld [vmem:[%s1 + $0x24] sm:$0xf]
    %v65 = vld [vmem:[%s3] sm:$0x1]
    %v66 = vlaneseq
    %v67 = vshrl.u32 %v66, 7
    %v68 = vsub.s32 0, %v67
    %v69 = vrot.slane %v65, %v68
    %v86 = vunpack.c.l.b16 %v39
    %v87 = vunpack.c.l.b16 %v40
    %v88 = vunpack.c.l.b16 %v41
    %v89 = vunpack.c.l.b16 %v42
    %v90 = vunpack.c.l.b16 %v43
    %v91 = vunpack.c.l.b16 %v44
    %v92 = vunpack.c.l.b16 %v45
    %v93 = vunpack.c.l.b16 %v46
    %v94 = vunpack.c.l.b16 %v47
    %v95 = vunpack.c.l.b16 %v48
    %v96 = vunpack.c.l.b16 %v49
    %v97 = vunpack.c.l.b16 %v50
    %v98 = vunpack.c.l.b16 %v51
    %v99 = vunpack.c.l.b16 %v52
    %v100 = vunpack.c.l.b16 %v53
    %v101 = vunpack.c.l.b16 %v54
    %v102 = vpack.c.b16 %v87, %v86
    %v103 = vpack.c.b16 %v89, %v88
    %v104 = vpack.c.b16 %v91, %v90
    %v105 = vpack.c.b16 %v93, %v92
    %v106 = vpack.c.b16 %v95, %v94
    %v107 = vpack.c.b16 %v97, %v96
    %v108 = vpack.c.b16 %v99, %v98
    %v109 = vpack.c.b16 %v101, %v100
    %v120 = vunpack.c.l.b16 %v55
    %v121 = vunpack.c.l.b16 %v56
    %v122 = vunpack.c.l.b16 %v57
    %v123 = vunpack.c.l.b16 %v58
    %v124 = vunpack.c.l.b16 %v59
    %v125 = vunpack.c.l.b16 %v60
    %v126 = vunpack.c.l.b16 %v61
    %v127 = vunpack.c.l.b16 %v62
    %v128 = vunpack.c.l.b16 %v63
    %v129 = vunpack.c.l.b16 %v64
    %v130 = vpack.c.b16 %v121, %v120
    %v131 = vpack.c.b16 %v123, %v122
    %v132 = vpack.c.b16 %v125, %v124
    %v133 = vpack.c.b16 %v127, %v126
    %v134 = vpack.c.b16 %v129, %v128
    %vm140 = vcmask 654336
    %v142 = vsel %vm140, %v102, 0
    %v145 = vsel %vm140, %v103, 0
    %v148 = vsel %vm140, %v104, 0
    %v151 = vsel %vm140, %v105, 0
    %v154 = vsel %vm140, %v106, 0
    %v157 = vsel %vm140, %v107, 0
    %v160 = vsel %vm140, %v108, 0
    %v163 = vsel %vm140, %v109, 0
    %165 = vmatprep.subr.bf16.mxu0 0
    %166 = vmatpush1.bf16.msra.mxu0 %v130
    %167 = vmatprep.subr.bf16.mxu0 0
    %168 = vmatpush1.bf16.msra.mxu0 %v131
    %169 = vmatprep.subr.bf16.mxu0 0
    %170 = vmatpush1.bf16.msra.mxu0 %v132
    %171 = vmatprep.subr.bf16.mxu0 0
    %172 = vmatpush1.bf16.msra.mxu0 %v133
    %173 = vmatprep.subr.bf16.mxu0 0
    %174 = vmatpush1.bf16.msra.mxu0 %v134
    %175 = vmatprep.subr.bf16.mxu0 0
    %176 = vmatpush1.bf16.msra.mxu0 0
    %177 = vmatprep.subr.bf16.mxu0 0
    %178 = vmatpush1.bf16.msra.mxu0 0
    %179 = vmatprep.subr.bf16.mxu0 0
    %180 = vmatpush1.bf16.msra.mxu0 0
    %181 = vmatprep.subr.bf16.mxu0 0
    %182 = vmatpush1.bf16.msra.mxu0 0
    %183 = vmatprep.subr.bf16.mxu0 0
    %184 = vmatpush1.bf16.msra.mxu0 0
    %185 = vmatprep.subr.bf16.mxu0 0
    %186 = vmatpush1.bf16.msra.mxu0 0
    %187 = vmatprep.subr.bf16.mxu0 0
    %188 = vmatpush1.bf16.msra.mxu0 0
    %189 = vmatprep.subr.bf16.mxu0 0
    %190 = vmatpush1.bf16.msra.mxu0 0
    %191 = vmatprep.subr.bf16.mxu0 0
    %192 = vmatpush1.bf16.msra.mxu0 0
    %193 = vmatprep.subr.bf16.mxu0 0
    %194 = vmatpush1.bf16.msra.mxu0 0
    %195 = vmatprep.subr.bf16.mxu0 0
    %196 = vmatpush1.bf16.msra.mxu0 0
    %197 = vmatprep.mubr.bf16.mxu0 0
    %198 = vmatmul.mubr.bf16.gmra.mrb[0].mxu0 %v142
    %v199 = vpop.f32.mrb[0].mxu0
    %v200 = vadd.f32 %v69, %v199
    %v201 = vpop.f32.mrb[0].mxu0
    %v202 = vpop.f32.mrb[0].mxu0
    %v203 = vadd.f32 %v69, %v202
    %v204 = vpop.f32.mrb[0].mxu0
    %205 = vmatprep.mubr.bf16.mxu0 0
    %206 = vmatmul.mubr.bf16.gmra.mrb[0].mxu0 %v145
    %v207 = vpop.f32.mrb[0].mxu0
    %v208 = vadd.f32 %v69, %v207
    %v209 = vpop.f32.mrb[0].mxu0
    %v210 = vpop.f32.mrb[0].mxu0
    %v211 = vadd.f32 %v69, %v210
    %v212 = vpop.f32.mrb[0].mxu0
    %213 = vmatprep.mubr.bf16.mxu0 0
    %214 = vmatmul.mubr.bf16.gmra.mrb[0].mxu0 %v148
    %v215 = vpop.f32.mrb[0].mxu0
    %v216 = vadd.f32 %v69, %v215
    %v217 = vpop.f32.mrb[0].mxu0
    %v218 = vpop.f32.mrb[0].mxu0
    %v219 = vadd.f32 %v69, %v218
    %v220 = vpop.f32.mrb[0].mxu0
    %221 = vmatprep.mubr.bf16.mxu0 0
    %222 = vmatmul.mubr.bf16.gmra.mrb[0].mxu0 %v151
    %v223 = vpop.f32.mrb[0].mxu0
    %v224 = vadd.f32 %v69, %v223
    %v225 = vpop.f32.mrb[0].mxu0
    %v226 = vpop.f32.mrb[0].mxu0
    %v227 = vadd.f32 %v69, %v226
    %v228 = vpop.f32.mrb[0].mxu0
    %229 = vmatprep.mubr.bf16.mxu0 0
    %230 = vmatmul.mubr.bf16.gmra.mrb[0].mxu0 %v154
    %v231 = vpop.f32.mrb[0].mxu0
    %v232 = vadd.f32 %v69, %v231
    %v233 = vpop.f32.mrb[0].mxu0
    %v234 = vpop.f32.mrb[0].mxu0
    %v235 = vadd.f32 %v69, %v234
    %v236 = vpop.f32.mrb[0].mxu0
    %237 = vmatprep.mubr.bf16.mxu0 0
    %238 = vmatmul.mubr.bf16.gmra.mrb[0].mxu0 %v157
    %v239 = vpop.f32.mrb[0].mxu0
    %v240 = vadd.f32 %v69, %v239
    %v241 = vpop.f32.mrb[0].mxu0
    %v242 = vpop.f32.mrb[0].mxu0
    %v243 = vadd.f32 %v69, %v242
    %v244 = vpop.f32.mrb[0].mxu0
    %245 = vmatprep.mubr.bf16.mxu0 0
    %246 = vmatmul.mubr.bf16.gmra.mrb[0].mxu0 %v160
    %v247 = vpop.f32.mrb[0].mxu0
    %v248 = vadd.f32 %v69, %v247
    %v249 = vpop.f32.mrb[0].mxu0
    %v250 = vpop.f32.mrb[0].mxu0
    %v251 = vadd.f32 %v69, %v250
    %v252 = vpop.f32.mrb[0].mxu0
    %253 = vmatprep.mubr.bf16.mxu0 0
    %254 = vmatmul.mubr.bf16.gmra.mrb[0].mxu0 %v163
    %v255 = vpop.f32.mrb[0].mxu0
    %v256 = vadd.f32 %v69, %v255
    %v257 = vpop.f32.mrb[0].mxu0
    %v258 = vpop.f32.mrb[0].mxu0
    %v259 = vadd.f32 %v69, %v258
    %v260 = vpop.f32.mrb[0].mxu0
    %261 = vdwg.mxu0
    %v262 = vmax.f32 %v200, 0.0
    %v263 = vmax.f32 %v203, 0.0
    %v264 = vmax.f32 %v208, 0.0
    %v265 = vmax.f32 %v211, 0.0
    %v266 = vmax.f32 %v216, 0.0
    %v267 = vmax.f32 %v219, 0.0
    %v268 = vmax.f32 %v224, 0.0
    %v269 = vmax.f32 %v227, 0.0
    %v270 = vmax.f32 %v232, 0.0
    %v271 = vmax.f32 %v235, 0.0
    %v272 = vmax.f32 %v240, 0.0
    %v273 = vmax.f32 %v243, 0.0
    %v274 = vmax.f32 %v248, 0.0
    %v275 = vmax.f32 %v251, 0.0
    %v276 = vmax.f32 %v256, 0.0
    %v277 = vmax.f32 %v259, 0.0
    %v278 = vpack.c.bf16 %v263, %v262
    %v279 = vpack.c.bf16 %v265, %v264
    %v280 = vpack.c.bf16 %v267, %v266
    %v281 = vpack.c.bf16 %v269, %v268
    %v282 = vpack.c.bf16 %v271, %v270
    %v283 = vpack.c.bf16 %v273, %v272
    %v284 = vpack.c.bf16 %v275, %v274
    %v285 = vpack.c.bf16 %v277, %v276
    %v286 = vld [vmem:[#allocation3] sm:$0xf]
    %v287 = vld [vmem:[#allocation3 + $0x4] sm:$0xf]
    %v288 = vld [vmem:[#allocation3 + $0x8] sm:$0xf]
    %v289 = vld [vmem:[#allocation3 + $0xc] sm:$0xf]
    %v290 = vld [vmem:[#allocation3 + $0x10] sm:$0xf]
    %v291 = vld [vmem:[#allocation3 + $0x14] sm:$0xf]
    %v292 = vld [vmem:[#allocation3 + $0x18] sm:$0xf]
    %v293 = vld [vmem:[#allocation3 + $0x1c] sm:$0xf]
    %v294 = vld [vmem:[#allocation3 + $0x20] sm:$0xf]
    %v295 = vld [vmem:[#allocation3 + $0x24] sm:$0xf]
    %v296 = vld [vmem:[#allocation3 + $0x28] sm:$0xf]
    %v297 = vld [vmem:[#allocation3 + $0x2c] sm:$0xf]
    %v298 = vld [vmem:[#allocation3 + $0x30] sm:$0xf]
    %v299 = vld [vmem:[#allocation3 + $0x34] sm:$0xf]
    %v300 = vld [vmem:[#allocation3 + $0x38] sm:$0xf]
    %v301 = vld [vmem:[#allocation3 + $0x3c] sm:$0xf]
    %v302 = vld [vmem:[%s3 + $0x1] sm:$0x1]
    %v303 = vlaneseq
    %v304 = vshrl.u32 %v303, 7
    %v305 = vsub.s32 0, %v304
    %v306 = vrot.slane %v302, %v305
    %v323 = vunpack.c.l.b16 %v286
    %v324 = vunpack.c.l.b16 %v287
    %v325 = vunpack.c.l.b16 %v288
    %v326 = vunpack.c.l.b16 %v289
    %v327 = vunpack.c.l.b16 %v290
    %v328 = vunpack.c.l.b16 %v291
    %v329 = vunpack.c.l.b16 %v292
    %v330 = vunpack.c.l.b16 %v293
    %v331 = vunpack.c.l.b16 %v294
    %v332 = vunpack.c.l.b16 %v295
    %v333 = vunpack.c.l.b16 %v296
    %v334 = vunpack.c.l.b16 %v297
    %v335 = vunpack.c.l.b16 %v298
    %v336 = vunpack.c.l.b16 %v299
    %v337 = vunpack.c.l.b16 %v300
    %v338 = vunpack.c.l.b16 %v301
    %v339 = vpack.c.b16 %v324, %v323
    %v340 = vpack.c.b16 %v326, %v325
    %v341 = vpack.c.b16 %v328, %v327
    %v342 = vpack.c.b16 %v330, %v329
    %v343 = vpack.c.b16 %v332, %v331
    %v344 = vpack.c.b16 %v334, %v333
    %v345 = vpack.c.b16 %v336, %v335
    %v346 = vpack.c.b16 %v338, %v337
    %355 = vmatprep.subr.bf16.mxu0 0
    %356 = vmatpush1.bf16.msra.mxu0 %v339
    %357 = vmatprep.subr.bf16.mxu0 0
    %358 = vmatpush1.bf16.msra.mxu0 %v340
    %359 = vmatprep.subr.bf16.mxu0 0
    %360 = vmatpush1.bf16.msra.mxu0 %v341
    %361 = vmatprep.subr.bf16.mxu0 0
    %362 = vmatpush1.bf16.msra.mxu0 %v342
    %363 = vmatprep.subr.bf16.mxu0 0
    %364 = vmatpush1.bf16.msra.mxu0 %v343
    %365 = vmatprep.subr.bf16.mxu0 0
    %366 = vmatpush1.bf16.msra.mxu0 %v344
    %367 = vmatprep.subr.bf16.mxu0 0
    %368 = vmatpush1.bf16.msra.mxu0 %v345
    %369 = vmatprep.subr.bf16.mxu0 0
    %370 = vmatpush1.bf16.msra.mxu0 %v346
    %371 = vmatprep.subr.bf16.mxu0 0
    %372 = vmatpush1.bf16.msra.mxu0 0
    %373 = vmatprep.subr.bf16.mxu0 0
    %374 = vmatpush1.bf16.msra.mxu0 0
    %375 = vmatprep.subr.bf16.mxu0 0
    %376 = vmatpush1.bf16.msra.mxu0 0
    %377 = vmatprep.subr.bf16.mxu0 0
    %378 = vmatpush1.bf16.msra.mxu0 0
    %379 = vmatprep.subr.bf16.mxu0 0
    %380 = vmatpush1.bf16.msra.mxu0 0
    %381 = vmatprep.subr.bf16.mxu0 0
    %382 = vmatpush1.bf16.msra.mxu0 0
    %383 = vmatprep.subr.bf16.mxu0 0
    %384 = vmatpush1.bf16.msra.mxu0 0
    %385 = vmatprep.subr.bf16.mxu0 0
    %386 = vmatpush1.bf16.msra.mxu0 0
    %387 = vmatprep.mubr.bf16.mxu0 0
    %388 = vmatmul.mubr.bf16.gmra.mrb[0].mxu0 %v278
    %v389 = vpop.f32.mrb[0].mxu0
    %v390 = vadd.f32 %v306, %v389
    %v391 = vpop.f32.mrb[0].mxu0
    %v392 = vpop.f32.mrb[0].mxu0
    %v393 = vadd.f32 %v306, %v392
    %v394 = vpop.f32.mrb[0].mxu0
    %395 = vmatprep.mubr.bf16.mxu0 0
    %396 = vmatmul.mubr.bf16.gmra.mrb[0].mxu0 %v279
    %v397 = vpop.f32.mrb[0].mxu0
    %v398 = vadd.f32 %v306, %v397
    %v399 = vpop.f32.mrb[0].mxu0
    %v400 = vpop.f32.mrb[0].mxu0
    %v401 = vadd.f32 %v306, %v400
    %v402 = vpop.f32.mrb[0].mxu0
    %403 = vmatprep.mubr.bf16.mxu0 0
    %404 = vmatmul.mubr.bf16.gmra.mrb[0].mxu0 %v280
    %v405 = vpop.f32.mrb[0].mxu0
    %v406 = vadd.f32 %v306, %v405
    %v407 = vpop.f32.mrb[0].mxu0
    %v408 = vpop.f32.mrb[0].mxu0
    %v409 = vadd.f32 %v306, %v408
    %v410 = vpop.f32.mrb[0].mxu0
    %411 = vmatprep.mubr.bf16.mxu0 0
    %412 = vmatmul.mubr.bf16.gmra.mrb[0].mxu0 %v281
    %v413 = vpop.f32.mrb[0].mxu0
    %v414 = vadd.f32 %v306, %v413
    %v415 = vpop.f32.mrb[0].mxu0
    %v416 = vpop.f32.mrb[0].mxu0
    %v417 = vadd.f32 %v306, %v416
    %v418 = vpop.f32.mrb[0].mxu0
    %419 = vmatprep.mubr.bf16.mxu0 0
    %420 = vmatmul.mubr.bf16.gmra.mrb[0].mxu0 %v282
    %v421 = vpop.f32.mrb[0].mxu0
    %v422 = vadd.f32 %v306, %v421
    %v423 = vpop.f32.mrb[0].mxu0
    %v424 = vpop.f32.mrb[0].mxu0
    %v425 = vadd.f32 %v306, %v424
    %v426 = vpop.f32.mrb[0].mxu0
    %427 = vmatprep.mubr.bf16.mxu0 0
    %428 = vmatmul.mubr.bf16.gmra.mrb[0].mxu0 %v283
    %v429 = vpop.f32.mrb[0].mxu0
    %v430 = vadd.f32 %v306, %v429
    %v431 = vpop.f32.mrb[0].mxu0
    %v432 = vpop.f32.mrb[0].mxu0
    %v433 = vadd.f32 %v306, %v432
    %v434 = vpop.f32.mrb[0].mxu0
    %435 = vmatprep.mubr.bf16.mxu0 0
    %436 = vmatmul.mubr.bf16.gmra.mrb[0].mxu0 %v284
    %v437 = vpop.f32.mrb[0].mxu0
    %v438 = vadd.f32 %v306, %v437
    %v439 = vpop.f32.mrb[0].mxu0
    %v440 = vpop.f32.mrb[0].mxu0
    %v441 = vadd.f32 %v306, %v440
    %v442 = vpop.f32.mrb[0].mxu0
    %443 = vmatprep.mubr.bf16.mxu0 0
    %444 = vmatmul.mubr.bf16.gmra.mrb[0].mxu0 %v285
    %v445 = vpop.f32.mrb[0].mxu0
    %v446 = vadd.f32 %v306, %v445
    %v447 = vpop.f32.mrb[0].mxu0
    %v448 = vpop.f32.mrb[0].mxu0
    %v449 = vadd.f32 %v306, %v448
    %v450 = vpop.f32.mrb[0].mxu0
    %451 = vdwg.mxu0
    %v452 = vmax.f32 %v390, 0.0
    %v453 = vmax.f32 %v393, 0.0
    %v454 = vmax.f32 %v398, 0.0
    %v455 = vmax.f32 %v401, 0.0
    %v456 = vmax.f32 %v406, 0.0
    %v457 = vmax.f32 %v409, 0.0
    %v458 = vmax.f32 %v414, 0.0
    %v459 = vmax.f32 %v417, 0.0
    %v460 = vmax.f32 %v422, 0.0
    %v461 = vmax.f32 %v425, 0.0
    %v462 = vmax.f32 %v430, 0.0
    %v463 = vmax.f32 %v433, 0.0
    %v464 = vmax.f32 %v438, 0.0
    %v465 = vmax.f32 %v441, 0.0
    %v466 = vmax.f32 %v446, 0.0
    %v467 = vmax.f32 %v449, 0.0
    %v468 = vpack.c.bf16 %v453, %v452
    %v469 = vpack.c.bf16 %v455, %v454
    %v470 = vpack.c.bf16 %v457, %v456
    %v471 = vpack.c.bf16 %v459, %v458
    %v472 = vpack.c.bf16 %v461, %v460
    %v473 = vpack.c.bf16 %v463, %v462
    %v474 = vpack.c.bf16 %v465, %v464
    %v475 = vpack.c.bf16 %v467, %v466
    %s476 = scalar_lea.vmem [#allocation3], 64
    %v477 = vld [vmem:[%s476] sm:$0xf]
    %v478 = vld [vmem:[%s476 + $0x4] sm:$0xf]
    %v479 = vld [vmem:[%s476 + $0x8] sm:$0xf]
    %v480 = vld [vmem:[%s476 + $0xc] sm:$0xf]
    %v481 = vld [vmem:[%s476 + $0x10] sm:$0xf]
    %v482 = vld [vmem:[%s476 + $0x14] sm:$0xf]
    %v483 = vld [vmem:[%s476 + $0x18] sm:$0xf]
    %v484 = vld [vmem:[%s476 + $0x1c] sm:$0xf]
    %v485 = vld [vmem:[%s476 + $0x20] sm:$0xf]
    %v486 = vld [vmem:[%s476 + $0x24] sm:$0xf]
    %v487 = vld [vmem:[%s476 + $0x28] sm:$0xf]
    %v488 = vld [vmem:[%s476 + $0x2c] sm:$0xf]
    %v489 = vld [vmem:[%s476 + $0x30] sm:$0xf]
    %v490 = vld [vmem:[%s476 + $0x34] sm:$0xf]
    %v491 = vld [vmem:[%s476 + $0x38] sm:$0xf]
    %v492 = vld [vmem:[%s476 + $0x3c] sm:$0xf]
    %v493 = vld [vmem:[%s3 + $0x2] sm:$0x1]
    %v494 = vlaneseq
    %v495 = vshrl.u32 %v494, 7
    %v496 = vsub.s32 0, %v495
    %v497 = vrot.slane %v493, %v496
    %v514 = vunpack.c.l.b16 %v477
    %v515 = vunpack.c.l.b16 %v478
    %v516 = vunpack.c.l.b16 %v479
    %v517 = vunpack.c.l.b16 %v480
    %v518 = vunpack.c.l.b16 %v481
    %v519 = vunpack.c.l.b16 %v482
    %v520 = vunpack.c.l.b16 %v483
    %v521 = vunpack.c.l.b16 %v484
    %v522 = vunpack.c.l.b16 %v485
    %v523 = vunpack.c.l.b16 %v486
    %v524 = vunpack.c.l.b16 %v487
    %v525 = vunpack.c.l.b16 %v488
    %v526 = vunpack.c.l.b16 %v489
    %v527 = vunpack.c.l.b16 %v490
    %v528 = vunpack.c.l.b16 %v491
    %v529 = vunpack.c.l.b16 %v492
    %v530 = vpack.c.b16 %v515, %v514
    %v531 = vpack.c.b16 %v517, %v516
    %v532 = vpack.c.b16 %v519, %v518
    %v533 = vpack.c.b16 %v521, %v520
    %v534 = vpack.c.b16 %v523, %v522
    %v535 = vpack.c.b16 %v525, %v524
    %v536 = vpack.c.b16 %v527, %v526
    %v537 = vpack.c.b16 %v529, %v528
    %546 = vmatprep.subr.bf16.mxu0 0
    %547 = vmatpush1.bf16.msra.mxu0 %v530
    %548 = vmatprep.subr.bf16.mxu0 0
    %549 = vmatpush1.bf16.msra.mxu0 %v531
    %550 = vmatprep.subr.bf16.mxu0 0
    %551 = vmatpush1.bf16.msra.mxu0 %v532
    %552 = vmatprep.subr.bf16.mxu0 0
    %553 = vmatpush1.bf16.msra.mxu0 %v533
    %554 = vmatprep.subr.bf16.mxu0 0
    %555 = vmatpush1.bf16.msra.mxu0 %v534
    %556 = vmatprep.subr.bf16.mxu0 0
    %557 = vmatpush1.bf16.msra.mxu0 %v535
    %558 = vmatprep.subr.bf16.mxu0 0
    %559 = vmatpush1.bf16.msra.mxu0 %v536
    %560 = vmatprep.subr.bf16.mxu0 0
    %561 = vmatpush1.bf16.msra.mxu0 %v537
    %562 = vmatprep.subr.bf16.mxu0 0
    %563 = vmatpush1.bf16.msra.mxu0 0
    %564 = vmatprep.subr.bf16.mxu0 0
    %565 = vmatpush1.bf16.msra.mxu0 0
    %566 = vmatprep.subr.bf16.mxu0 0
    %567 = vmatpush1.bf16.msra.mxu0 0
    %568 = vmatprep.subr.bf16.mxu0 0
    %569 = vmatpush1.bf16.msra.mxu0 0
    %570 = vmatprep.subr.bf16.mxu0 0
    %571 = vmatpush1.bf16.msra.mxu0 0
    %572 = vmatprep.subr.bf16.mxu0 0
    %573 = vmatpush1.bf16.msra.mxu0 0
    %574 = vmatprep.subr.bf16.mxu0 0
    %575 = vmatpush1.bf16.msra.mxu0 0
    %576 = vmatprep.subr.bf16.mxu0 0
    %577 = vmatpush1.bf16.msra.mxu0 0
    %578 = vmatprep.mubr.bf16.mxu0 0
    %579 = vmatmul.mubr.bf16.gmra.mrb[0].mxu0 %v468
    %v580 = vpop.f32.mrb[0].mxu0
    %v581 = vadd.f32 %v497, %v580
    %v582 = vpop.f32.mrb[0].mxu0
    %v583 = vpop.f32.mrb[0].mxu0
    %v584 = vadd.f32 %v497, %v583
    %v585 = vpop.f32.mrb[0].mxu0
    %586 = vmatprep.mubr.bf16.mxu0 0
    %587 = vmatmul.mubr.bf16.gmra.mrb[0].mxu0 %v469
    %v588 = vpop.f32.mrb[0].mxu0
    %v589 = vadd.f32 %v497, %v588
    %v590 = vpop.f32.mrb[0].mxu0
    %v591 = vpop.f32.mrb[0].mxu0
    %v592 = vadd.f32 %v497, %v591
    %v593 = vpop.f32.mrb[0].mxu0
    %594 = vmatprep.mubr.bf16.mxu0 0
    %595 = vmatmul.mubr.bf16.gmra.mrb[0].mxu0 %v470
    %v596 = vpop.f32.mrb[0].mxu0
    %v597 = vadd.f32 %v497, %v596
    %v598 = vpop.f32.mrb[0].mxu0
    %v599 = vpop.f32.mrb[0].mxu0
    %v600 = vadd.f32 %v497, %v599
    %v601 = vpop.f32.mrb[0].mxu0
    %602 = vmatprep.mubr.bf16.mxu0 0
    %603 = vmatmul.mubr.bf16.gmra.mrb[0].mxu0 %v471
    %v604 = vpop.f32.mrb[0].mxu0
    %v605 = vadd.f32 %v497, %v604
    %v606 = vpop.f32.mrb[0].mxu0
    %v607 = vpop.f32.mrb[0].mxu0
    %v608 = vadd.f32 %v497, %v607
    %v609 = vpop.f32.mrb[0].mxu0
    %610 = vmatprep.mubr.bf16.mxu0 0
    %611 = vmatmul.mubr.bf16.gmra.mrb[0].mxu0 %v472
    %v612 = vpop.f32.mrb[0].mxu0
    %v613 = vadd.f32 %v497, %v612
    %v614 = vpop.f32.mrb[0].mxu0
    %v615 = vpop.f32.mrb[0].mxu0
    %v616 = vadd.f32 %v497, %v615
    %v617 = vpop.f32.mrb[0].mxu0
    %618 = vmatprep.mubr.bf16.mxu0 0
    %619 = vmatmul.mubr.bf16.gmra.mrb[0].mxu0 %v473
    %v620 = vpop.f32.mrb[0].mxu0
    %v621 = vadd.f32 %v497, %v620
    %v622 = vpop.f32.mrb[0].mxu0
    %v623 = vpop.f32.mrb[0].mxu0
    %v624 = vadd.f32 %v497, %v623
    %v625 = vpop.f32.mrb[0].mxu0
    %626 = vmatprep.mubr.bf16.mxu0 0
    %627 = vmatmul.mubr.bf16.gmra.mrb[0].mxu0 %v474
    %v628 = vpop.f32.mrb[0].mxu0
    %v629 = vadd.f32 %v497, %v628
    %v630 = vpop.f32.mrb[0].mxu0
    %v631 = vpop.f32.mrb[0].mxu0
    %v632 = vadd.f32 %v497, %v631
    %v633 = vpop.f32.mrb[0].mxu0
    %634 = vmatprep.mubr.bf16.mxu0 0
    %635 = vmatmul.mubr.bf16.gmra.mrb[0].mxu0 %v475
    %v636 = vpop.f32.mrb[0].mxu0
    %v637 = vadd.f32 %v497, %v636
    %v638 = vpop.f32.mrb[0].mxu0
    %v639 = vpop.f32.mrb[0].mxu0
    %v640 = vadd.f32 %v497, %v639
    %v641 = vpop.f32.mrb[0].mxu0
    %642 = vdwg.mxu0
    %v643 = vmax.f32 %v581, 0.0
    %v644 = vmax.f32 %v584, 0.0
    %v645 = vmax.f32 %v589, 0.0
    %v646 = vmax.f32 %v592, 0.0
    %v647 = vmax.f32 %v597, 0.0
    %v648 = vmax.f32 %v600, 0.0
    %v649 = vmax.f32 %v605, 0.0
    %v650 = vmax.f32 %v608, 0.0
    %v651 = vmax.f32 %v613, 0.0
    %v652 = vmax.f32 %v616, 0.0
    %v653 = vmax.f32 %v621, 0.0
    %v654 = vmax.f32 %v624, 0.0
    %v655 = vmax.f32 %v629, 0.0
    %v656 = vmax.f32 %v632, 0.0
    %v657 = vmax.f32 %v637, 0.0
    %v658 = vmax.f32 %v640, 0.0
    %v659 = vpack.c.bf16 %v644, %v643
    %v660 = vpack.c.bf16 %v646, %v645
    %v661 = vpack.c.bf16 %v648, %v647
    %v662 = vpack.c.bf16 %v650, %v649
    %v663 = vpack.c.bf16 %v652, %v651
    %v664 = vpack.c.bf16 %v654, %v653
    %v665 = vpack.c.bf16 %v656, %v655
    %v666 = vpack.c.bf16 %v658, %v657
    %v667 = vld [vmem:[%s4] sm:$0xf]
    %v668 = vld [vmem:[%s4 + $0x4] sm:$0xf]
    %v669 = vld [vmem:[%s4 + $0x8] sm:$0xf]
    %v670 = vld [vmem:[%s4 + $0xc] sm:$0xf]
    %v671 = vld [vmem:[%s4 + $0x10] sm:$0xf]
    %v672 = vld [vmem:[%s4 + $0x14] sm:$0xf]
    %v673 = vld [vmem:[%s4 + $0x18] sm:$0xf]
    %v674 = vld [vmem:[%s4 + $0x1c] sm:$0xf]
    %v675 = vld [vmem:[%s4 + $0x20] sm:$0xf]
    %v676 = vld [vmem:[%s4 + $0x24] sm:$0xf]
    %v677 = vld [vmem:[%s4 + $0x28] sm:$0xf]
    %v678 = vld [vmem:[%s4 + $0x2c] sm:$0xf]
    %v679 = vld [vmem:[%s4 + $0x30] sm:$0xf]
    %v680 = vld [vmem:[%s4 + $0x34] sm:$0xf]
    %v681 = vld [vmem:[%s4 + $0x38] sm:$0xf]
    %v682 = vld [vmem:[%s4 + $0x3c] sm:$0xf]
    %v699 = vunpack.c.l.b16 %v667
    %v700 = vunpack.c.l.b16 %v668
    %v701 = vunpack.c.l.b16 %v669
    %v702 = vunpack.c.l.b16 %v670
    %v703 = vunpack.c.l.b16 %v671
    %v704 = vunpack.c.l.b16 %v672
    %v705 = vunpack.c.l.b16 %v673
    %v706 = vunpack.c.l.b16 %v674
    %v707 = vunpack.c.l.b16 %v675
    %v708 = vunpack.c.l.b16 %v676
    %v709 = vunpack.c.l.b16 %v677
    %v710 = vunpack.c.l.b16 %v678
    %v711 = vunpack.c.l.b16 %v679
    %v712 = vunpack.c.l.b16 %v680
    %v713 = vunpack.c.l.b16 %v681
    %v714 = vunpack.c.l.b16 %v682
    %v715 = vpack.c.b16 %v700, %v699
    %v716 = vpack.c.b16 %v702, %v701
    %v717 = vpack.c.b16 %v704, %v703
    %v718 = vpack.c.b16 %v706, %v705
    %v719 = vpack.c.b16 %v708, %v707
    %v720 = vpack.c.b16 %v710, %v709
    %v721 = vpack.c.b16 %v712, %v711
    %v722 = vpack.c.b16 %v714, %v713
    %731 = vmatprep.subr.bf16.mxu0 0
    %732 = vmatpush1.bf16.msra.mxu0 %v715
    %733 = vmatprep.subr.bf16.mxu0 0
    %734 = vmatpush1.bf16.msra.mxu0 %v716
    %735 = vmatprep.subr.bf16.mxu0 0
    %736 = vmatpush1.bf16.msra.mxu0 %v717
    %737 = vmatprep.subr.bf16.mxu0 0
    %738 = vmatpush1.bf16.msra.mxu0 %v718
    %739 = vmatprep.subr.bf16.mxu0 0
    %740 = vmatpush1.bf16.msra.mxu0 %v719
    %741 = vmatprep.subr.bf16.mxu0 0
    %742 = vmatpush1.bf16.msra.mxu0 %v720
    %743 = vmatprep.subr.bf16.mxu0 0
    %744 = vmatpush1.bf16.msra.mxu0 %v721
    %745 = vmatprep.subr.bf16.mxu0 0
    %746 = vmatpush1.bf16.msra.mxu0 %v722
    %747 = vmatprep.subr.bf16.mxu0 0
    %748 = vmatpush1.bf16.msra.mxu0 0
    %749 = vmatprep.subr.bf16.mxu0 0
    %750 = vmatpush1.bf16.msra.mxu0 0
    %751 = vmatprep.subr.bf16.mxu0 0
    %752 = vmatpush1.bf16.msra.mxu0 0
    %753 = vmatprep.subr.bf16.mxu0 0
    %754 = vmatpush1.bf16.msra.mxu0 0
    %755 = vmatprep.subr.bf16.mxu0 0
    %756 = vmatpush1.bf16.msra.mxu0 0
    %757 = vmatprep.subr.bf16.mxu0 0
    %758 = vmatpush1.bf16.msra.mxu0 0
    %759 = vmatprep.subr.bf16.mxu0 0
    %760 = vmatpush1.bf16.msra.mxu0 0
    %761 = vmatprep.subr.bf16.mxu0 0
    %762 = vmatpush1.bf16.msra.mxu0 0
    %763 = vmatprep.mubr.bf16.mxu0 0
    %764 = vmatmul.mubr.bf16.gmra.mrb[0].mxu0 %v659
    %v765 = vpop.f32.mrb[0].mxu0
    %v766 = vadd.f32 0.0, %v765
    %v767 = vpop.f32.mrb[0].mxu0
    %v768 = vpop.f32.mrb[0].mxu0
    %v769 = vadd.f32 0.0, %v768
    %v770 = vpop.f32.mrb[0].mxu0
    %771 = vmatprep.mubr.bf16.mxu0 0
    %772 = vmatmul.mubr.bf16.gmra.mrb[0].mxu0 %v660
    %v773 = vpop.f32.mrb[0].mxu0
    %v774 = vadd.f32 0.0, %v773
    %v775 = vpop.f32.mrb[0].mxu0
    %v776 = vpop.f32.mrb[0].mxu0
    %v777 = vadd.f32 0.0, %v776
    %v778 = vpop.f32.mrb[0].mxu0
    %779 = vmatprep.mubr.bf16.mxu0 0
    %780 = vmatmul.mubr.bf16.gmra.mrb[0].mxu0 %v661
    %v781 = vpop.f32.mrb[0].mxu0
    %v782 = vadd.f32 0.0, %v781
    %v783 = vpop.f32.mrb[0].mxu0
    %v784 = vpop.f32.mrb[0].mxu0
    %v785 = vadd.f32 0.0, %v784
    %v786 = vpop.f32.mrb[0].mxu0
    %787 = vmatprep.mubr.bf16.mxu0 0
    %788 = vmatmul.mubr.bf16.gmra.mrb[0].mxu0 %v662
    %v789 = vpop.f32.mrb[0].mxu0
    %v790 = vadd.f32 0.0, %v789
    %v791 = vpop.f32.mrb[0].mxu0
    %v792 = vpop.f32.mrb[0].mxu0
    %v793 = vadd.f32 0.0, %v792
    %v794 = vpop.f32.mrb[0].mxu0
    %795 = vmatprep.mubr.bf16.mxu0 0
    %796 = vmatmul.mubr.bf16.gmra.mrb[0].mxu0 %v663
    %v797 = vpop.f32.mrb[0].mxu0
    %v798 = vadd.f32 0.0, %v797
    %v799 = vpop.f32.mrb[0].mxu0
    %v800 = vpop.f32.mrb[0].mxu0
    %v801 = vadd.f32 0.0, %v800
    %v802 = vpop.f32.mrb[0].mxu0
    %803 = vmatprep.mubr.bf16.mxu0 0
    %804 = vmatmul.mubr.bf16.gmra.mrb[0].mxu0 %v664
    %v805 = vpop.f32.mrb[0].mxu0
    %v806 = vadd.f32 0.0, %v805
    %v807 = vpop.f32.mrb[0].mxu0
    %v808 = vpop.f32.mrb[0].mxu0
    %v809 = vadd.f32 0.0, %v808
    %v810 = vpop.f32.mrb[0].mxu0
    %811 = vmatprep.mubr.bf16.mxu0 0
    %812 = vmatmul.mubr.bf16.gmra.mrb[0].mxu0 %v665
    %v813 = vpop.f32.mrb[0].mxu0
    %v814 = vadd.f32 0.0, %v813
    %v815 = vpop.f32.mrb[0].mxu0
    %v816 = vpop.f32.mrb[0].mxu0
    %v817 = vadd.f32 0.0, %v816
    %v818 = vpop.f32.mrb[0].mxu0
    %819 = vmatprep.mubr.bf16.mxu0 0
    %820 = vmatmul.mubr.bf16.gmra.mrb[0].mxu0 %v666
    %v821 = vpop.f32.mrb[0].mxu0
    %v822 = vadd.f32 0.0, %v821
    %v823 = vpop.f32.mrb[0].mxu0
    %v824 = vpop.f32.mrb[0].mxu0
    %v825 = vadd.f32 0.0, %v824
    %v826 = vpop.f32.mrb[0].mxu0
    %827 = vdwg.mxu0
    %s828 = sld [smem:[#allocation2]]
    %v829 = vstv %s828
    %v830 = vadd.f32 %v766, %v829
    %v831 = vadd.f32 %v769, %v829
    %v832 = vadd.f32 %v774, %v829
    %v833 = vadd.f32 %v777, %v829
    %v834 = vadd.f32 %v782, %v829
    %v835 = vadd.f32 %v785, %v829
    %v836 = vadd.f32 %v790, %v829
    %v837 = vadd.f32 %v793, %v829
    %v838 = vadd.f32 %v798, %v829
    %v839 = vadd.f32 %v801, %v829
    %v840 = vadd.f32 %v806, %v829
    %v841 = vadd.f32 %v809, %v829
    %v842 = vadd.f32 %v814, %v829
    %v843 = vadd.f32 %v817, %v829
    %v844 = vadd.f32 %v822, %v829
    %v845 = vadd.f32 %v825, %v829
    %v846 = vtanh.pop %v830
    %v847 = vtanh.pop %v831
    %v848 = vtanh.pop %v832
    %v849 = vtanh.pop %v833
    %v850 = vtanh.pop %v834
    %v851 = vtanh.pop %v835
    %v852 = vtanh.pop %v836
    %v853 = vtanh.pop %v837
    %v854 = vtanh.pop %v838
    %v855 = vtanh.pop %v839
    %v856 = vtanh.pop %v840
    %v857 = vtanh.pop %v841
    %v858 = vtanh.pop %v842
    %v859 = vtanh.pop %v843
    %v860 = vtanh.pop %v844
    %v861 = vtanh.pop %v845
    %vm862 = vcmask 7168
    %863 = vst.msk [vmem:[%s6] sm:$0xff] %vm862, %v846
    %864 = vst.msk [vmem:[%s6 + $0x8] sm:$0xff] %vm862, %v847
    %865 = vst.msk [vmem:[%s6 + $0x10] sm:$0xff] %vm862, %v848
    %866 = vst.msk [vmem:[%s6 + $0x18] sm:$0xff] %vm862, %v849
    %867 = vst.msk [vmem:[%s6 + $0x20] sm:$0xff] %vm862, %v850
    %868 = vst.msk [vmem:[%s6 + $0x28] sm:$0xff] %vm862, %v851
    %869 = vst.msk [vmem:[%s6 + $0x30] sm:$0xff] %vm862, %v852
    %870 = vst.msk [vmem:[%s6 + $0x38] sm:$0xff] %vm862, %v853
    %871 = vst.msk [vmem:[%s6 + $0x40] sm:$0xff] %vm862, %v854
    %872 = vst.msk [vmem:[%s6 + $0x48] sm:$0xff] %vm862, %v855
    %873 = vst.msk [vmem:[%s6 + $0x50] sm:$0xff] %vm862, %v856
    %874 = vst.msk [vmem:[%s6 + $0x58] sm:$0xff] %vm862, %v857
    %875 = vst.msk [vmem:[%s6 + $0x60] sm:$0xff] %vm862, %v858
    %876 = vst.msk [vmem:[%s6 + $0x68] sm:$0xff] %vm862, %v859
    %877 = vst.msk [vmem:[%s6 + $0x70] sm:$0xff] %vm862, %v860
    %878 = vst.msk [vmem:[%s6 + $0x78] sm:$0xff] %vm862, %v861
    // Predicated region
    $region30: #{tpu_custom_call.1} parent=1 // pred_check
      _
    $region31: #{tpu_custom_call.1} parent=1 // pred_check_branch
      %880 = sbr.rel (0) target = $region33
    $region32: #{tpu_custom_call.1} parent=1 // pred_region
      _
    $region33: #{tpu_custom_call.1} parent=1 // pred_fallthru
      _
    // Predicated region
    $region34: #{tpu_custom_call.1} parent=1 // pred_check
      _
    $region35: #{tpu_custom_call.1} parent=1 // pred_check_branch
      %882 = sbr.rel (0) target = $region37
    $region36: #{tpu_custom_call.1} parent=1 // pred_region
      _
    $region37: #{tpu_custom_call.1} parent=1 // pred_fallthru
      _
    %883 = vsyncpa [#allocation4], 1

</llo_original>
